<compile_context>
chip_gen: v7x
topology: tpu7x:2x2x1
jax: 0.10.0
libtpu: 0.0.40
codegen_flags: <defaults>
</compile_context>

<pallas_src>
import jax
import jax.numpy as jnp
from jax.experimental import pallas as pl
from jax.experimental.pallas import tpu as pltpu


_MATMUL_DTYPE = jnp.bfloat16  # MXU operand dtype; accumulation stays f32


# ----------------------------- Pallas kernel --------------------------------
def _odefunc_kernel(
    xin_ref,                     # (TB, L+V) bf16 batch tile (concat[latent, voxel])
    wbig_ref, b0_ref,            # fused input-layer + stacked voxel weights, eff bias
    w1_ref, b1_ref,              # hidden layer 0 (plain)
    w2_ref, b2_ref,              # hidden layer 1 (skip), eff bias
    w3_ref, b3_ref,              # hidden layer 2 (plain)
    w4_ref, b4_ref,              # hidden layer 3 (skip), eff bias
    wo_ref, bo_ref,              # output layer
    out_ref,
):
    H = w1_ref.shape[0]

    def relu_cast(y):
        # ReLU / bias adds in f32 (no bf16 VPU on v5e), narrow for the next MXU pass.
        return jnp.maximum(y, 0.0).astype(_MATMUL_DTYPE)

    # One MXU pass computes the input layer AND both skip-layer voxel projections:
    #   xin @ [[w0l, 0, 0], [w0v, w2v, w4v]]  ->  (TB, 3H) f32
    big = jnp.dot(xin_ref[...], wbig_ref[...], preferred_element_type=jnp.float32)
    vproj2 = big[:, H:2 * H]     # vox @ w2v
    vproj4 = big[:, 2 * H:]      # vox @ w4v

    # input_layer + ReLU
    x = relu_cast(big[:, :H] + b0_ref[...])
    # hidden layer 0 (plain): Linear(H, H) + ReLU
    x = relu_cast(jnp.dot(x, w1_ref[...], preferred_element_type=jnp.float32) + b1_ref[...])
    # hidden layer 1 (skip): concat([x, vox, t]) -> Linear + ReLU  (concat-free form)
    x = relu_cast(jnp.dot(x, w2_ref[...], preferred_element_type=jnp.float32) + vproj2 + b2_ref[...])
    # hidden layer 2 (plain)
    x = relu_cast(jnp.dot(x, w3_ref[...], preferred_element_type=jnp.float32) + b3_ref[...])
    # hidden layer 3 (skip)
    x = relu_cast(jnp.dot(x, w4_ref[...], preferred_element_type=jnp.float32) + vproj4 + b4_ref[...])
    # output layer (no activation), f32 out
    out_ref[...] = jnp.dot(x, wo_ref[...], preferred_element_type=jnp.float32) + bo_ref[...]


# ------------------------------ wrappers --------------------------------------
def _round_up(n, m):
    return (n + m - 1) // m * m


def prepare_params(params):
    """One-time, t-independent weight prep (merge / stack / bf16 cast).

    Hoist this OUT of the ODE-solver loop: it must not be re-run per evaluation."""
    (w0l, w0v, w0t, b0, w1, b1, w2h, w2v, w2t, b2,
     w3, b3, w4h, w4v, w4t, b4, wo, bo) = params
    L, H = w0l.shape
    V = w0v.shape[0]

    # Fused input-layer + stacked skip-layer voxel weights -> one small-K dot.
    #   [[w0l,  0 ,  0 ],
    #    [w0v, w2v, w4v]]   shape (L+V, 3H)
    zeros = jnp.zeros((L, 2 * H), jnp.float32)
    wbig = jnp.concatenate(
        [jnp.concatenate([w0l, zeros], axis=1),
         jnp.concatenate([w0v, w2v, w4v], axis=1)], axis=0).astype(_MATMUL_DTYPE)

    mm = lambda w: w.astype(_MATMUL_DTYPE)
    return {
        "dims": (L, V, H),
        "wbig": wbig,
        "w1": mm(w1), "w2": mm(w2h), "w3": mm(w3), "w4": mm(w4h), "wo": mm(wo),
        "b0": b0, "w0t": w0t, "b1": b1, "b2": b2, "w2t": w2t,
        "b3": b3, "b4": b4, "w4t": w4t, "bo": bo,
    }


def odefunc_forward(t, latent, voxel_latent, prep, *, max_tile_b=1024):
    """Pallas implementation of ODEFunc.forward(t, latent, voxel_latent)."""
    L, V, H = prep["dims"]
    batch = latent.shape[0]
    assert latent.shape[1] == L and voxel_latent.shape[1] == V

    t = jnp.asarray(t, jnp.float32)
    # Fold the scalar t into effective biases once per call (tiny (1,H) ops).
    b0 = prep["b0"] + t * prep["w0t"]
    b2 = prep["b2"] + t * prep["w2t"]
    b4 = prep["b4"] + t * prep["w4t"]

    # Single streamed activation input (bf16): concat([latent, voxel]) once.
    xin = jnp.concatenate([latent, voxel_latent], axis=-1).astype(_MATMUL_DTYPE)

    # ---- batch tiling: large, 16-row-aligned tiles (bf16 sublane packing) ----
    tile_b = _round_up(min(max_tile_b, _round_up(batch, 16)), 16)
    padded_batch = _round_up(batch, tile_b)
    num_tiles = padded_batch // tile_b
    if num_tiles == 1 and tile_b >= 32:
        # v7x has 2 TensorCores: give the "parallel" grid axis >= 2 steps.
        tile_b = _round_up(tile_b // 2, 16)
        padded_batch = _round_up(batch, tile_b)
        num_tiles = padded_batch // tile_b
    if padded_batch != batch:
        xin = jnp.pad(xin, ((0, padded_batch - batch), (0, 0)))

    weights = (prep["wbig"], b0, prep["w1"], prep["b1"], prep["w2"], b2,
               prep["w3"], prep["b3"], prep["w4"], b4, prep["wo"], prep["bo"])

    # ---- block specs ----
    def resident_spec(w):
        # Constant block index + single buffer: weight is DMA'd once and stays
        # VMEM-resident across all batch tiles.
        return pl.BlockSpec(w.shape, lambda i: (0, 0), pipeline_mode=pl.Buffered(1))

    in_specs = ([pl.BlockSpec((tile_b, L + V), lambda i: (i, 0))]
                + [resident_spec(w) for w in weights])
    out_spec = pl.BlockSpec((tile_b, L), lambda i: (i, 0))

    # ---- generation-aware VMEM budget ----
    try:
        phys_vmem = int(pltpu.get_tpu_info().vmem_capacity_bytes)
    except Exception:
        phys_vmem = 64 << 20                    # conservative v7x fallback
    vmem_cap = phys_vmem - (8 << 20)            # headroom for compiler scratch
    weight_bytes = sum(int(w.size) * w.dtype.itemsize for w in weights)  # x1 (Buffered(1))
    io_bytes = 2 * tile_b * (L + V) * 2 + 2 * tile_b * L * 4             # double-buffered I/O
    if weight_bytes + io_bytes + (2 << 20) > vmem_cap:
        # TODO(synk): tile the hidden dimension over a second grid axis when the
        # resident weights exceed the per-core VMEM budget (very large hidden_dim on v7x).
        raise ValueError("ODEFunc weights do not fit VMEM-resident on this chip.")
    vmem_limit = int(min(max(weight_bytes + io_bytes + (4 << 20), 32 << 20), vmem_cap))

    out = pl.pallas_call(
        _odefunc_kernel,
        out_shape=jax.ShapeDtypeStruct((padded_batch, L), jnp.float32),
        grid=(num_tiles,),
        in_specs=in_specs,
        out_specs=out_spec,
        compiler_params=pltpu.CompilerParams(
            dimension_semantics=("parallel",),
            vmem_limit_bytes=vmem_limit,
        ),
    )(xin, *weights)

    return out[:batch]


# ------------------------- deterministic parameters ---------------------------
def make_params(key, latent_dim, voxel_latent_dim, hidden_dim):
    """Weights of ODEFunc(latent_dim, voxel_latent_dim, n_layers=4, hidden_dim,
    skip_frequency=2), with concatenated-input Linears pre-split per input chunk.
    Weights are (in_features, out_features), i.e. PyTorch W pre-transposed."""
    L, V, H = latent_dim, voxel_latent_dim, hidden_dim
    keys = iter(jax.random.split(key, 32))

    def w(shape, fan_in):
        return jax.random.normal(next(keys), shape, jnp.float32) / jnp.sqrt(fan_in)

    def b(shape):
        return jax.random.normal(next(keys), shape, jnp.float32) * 0.01

    params = []
    # input_layer: Linear(L + V + 1, H), split by input chunk
    fan = L + V + 1
    params += [w((L, H), fan), w((V, H), fan), w((1, H), fan), b((1, H))]
    # hidden layer 0: Linear(H, H)
    params += [w((H, H), H), b((1, H))]
    # hidden layer 1 (skip): Linear(H + V + 1, H), split
    fan = H + V + 1
    params += [w((H, H), fan), w((V, H), fan), w((1, H), fan), b((1, H))]
    # hidden layer 2: Linear(H, H)
    params += [w((H, H), H), b((1, H))]
    # hidden layer 3 (skip): Linear(H + V + 1, H), split
    fan = H + V + 1
    params += [w((H, H), fan), w((V, H), fan), w((1, H), fan), b((1, H))]
    # output layer: Linear(H, L)
    params += [w((H, L), H), b((1, L))]
    return params


# --------------------------- pure-JAX reference -------------------------------
def odefunc_ref(t, latent, voxel_latent, params):
    (w0l, w0v, w0t, b0, w1, b1, w2h, w2v, w2t, b2,
     w3, b3, w4h, w4v, w4t, b4, wo, bo) = params
    B = latent.shape[0]
    tcol = jnp.full((B, 1), t, dtype=jnp.float32)

    x = jnp.concatenate([latent, voxel_latent, tcol], axis=-1)
    w0 = jnp.concatenate([w0l, w0v, w0t], axis=0)
    x = jax.nn.relu(x @ w0 + b0)
    x = jax.nn.relu(x @ w1 + b1)
    x = jnp.concatenate([x, voxel_latent, tcol], axis=-1)
    w2 = jnp.concatenate([w2h, w2v, w2t], axis=0)
    x = jax.nn.relu(x @ w2 + b2)
    x = jax.nn.relu(x @ w3 + b3)
    x = jnp.concatenate([x, voxel_latent, tcol], axis=-1)
    w4 = jnp.concatenate([w4h, w4v, w4t], axis=0)
    x = jax.nn.relu(x @ w4 + b4)
    return x @ wo + bo


# ------------------------------------ main -------------------------------------
if __name__ == "__main__":
    batch = 2
    latent_dim = 16
    voxel_latent_dim = 8
    hidden_dim = 32

    key = jax.random.PRNGKey(0)
    k_lat, k_vox, k_params = jax.random.split(key, 3)

    latent = jax.random.normal(k_lat, (batch, latent_dim), jnp.float32)
    voxel_latent = jax.random.normal(k_vox, (batch, voxel_latent_dim), jnp.float32)
    t = jnp.float32(0.5)

    params = make_params(k_params, latent_dim, voxel_latent_dim, hidden_dim)
    prep = prepare_params(params)        # hoisted, t-independent weight prep

    out = odefunc_forward(t, latent, voxel_latent, prep)
    out = jax.block_until_ready(out)

    ref = odefunc_ref(t, latent, voxel_latent, params)
    assert out.shape == (batch, latent_dim)
    # bf16 MXU operands vs pure-f32 reference -> modest tolerance
    assert jnp.allclose(out, ref, rtol=5e-2, atol=5e-2), "mismatch vs JAX reference"

    print("KERNEL_OK")
</pallas_src>

<mosaic_0001>
module attributes {stable_mosaic.version = 11 : i64} {
  func.func @_odefunc_kernel(%arg0: i32, %arg1: memref<16x24xbf16, #tpu.memory_space<vmem>>, %arg2: memref<24x96xbf16, #tpu.memory_space<vmem>>, %arg3: memref<1x32xf32, #tpu.memory_space<vmem>>, %arg4: memref<32x32xbf16, #tpu.memory_space<vmem>>, %arg5: memref<1x32xf32, #tpu.memory_space<vmem>>, %arg6: memref<32x32xbf16, #tpu.memory_space<vmem>>, %arg7: memref<1x32xf32, #tpu.memory_space<vmem>>, %arg8: memref<32x32xbf16, #tpu.memory_space<vmem>>, %arg9: memref<1x32xf32, #tpu.memory_space<vmem>>, %arg10: memref<32x32xbf16, #tpu.memory_space<vmem>>, %arg11: memref<1x32xf32, #tpu.memory_space<vmem>>, %arg12: memref<32x16xbf16, #tpu.memory_space<vmem>>, %arg13: memref<1x16xf32, #tpu.memory_space<vmem>>, %arg14: memref<16x16xf32, #tpu.memory_space<vmem>>) attributes {dimension_semantics = [#tpu.dimension_semantics<parallel>], iteration_bounds = array<i64: 1>, scalar_prefetch = 0 : i64, scratch_operands = 0 : i64, tpu.core_type = #tpu.core_type<tc>, window_params = [{transform_indices = @transform_0, window_bounds = array<i64: 16, 24>}, {pipeline_mode = #tpu.pipeline_mode<synchronous>, transform_indices = @transform_1, window_bounds = array<i64: 24, 96>}, {pipeline_mode = #tpu.pipeline_mode<synchronous>, transform_indices = @transform_2, window_bounds = array<i64: 1, 32>}, {pipeline_mode = #tpu.pipeline_mode<synchronous>, transform_indices = @transform_3, window_bounds = array<i64: 32, 32>}, {pipeline_mode = #tpu.pipeline_mode<synchronous>, transform_indices = @transform_4, window_bounds = array<i64: 1, 32>}, {pipeline_mode = #tpu.pipeline_mode<synchronous>, transform_indices = @transform_5, window_bounds = array<i64: 32, 32>}, {pipeline_mode = #tpu.pipeline_mode<synchronous>, transform_indices = @transform_6, window_bounds = array<i64: 1, 32>}, {pipeline_mode = #tpu.pipeline_mode<synchronous>, transform_indices = @transform_7, window_bounds = array<i64: 32, 32>}, {pipeline_mode = #tpu.pipeline_mode<synchronous>, transform_indices = @transform_8, window_bounds = array<i64: 1, 32>}, {pipeline_mode = #tpu.pipeline_mode<synchronous>, transform_indices = @transform_9, window_bounds = array<i64: 32, 32>}, {pipeline_mode = #tpu.pipeline_mode<synchronous>, transform_indices = @transform_10, window_bounds = array<i64: 1, 32>}, {pipeline_mode = #tpu.pipeline_mode<synchronous>, transform_indices = @transform_11, window_bounds = array<i64: 32, 16>}, {pipeline_mode = #tpu.pipeline_mode<synchronous>, transform_indices = @transform_12, window_bounds = array<i64: 1, 16>}, {transform_indices = @transform_13, window_bounds = array<i64: 16, 16>}]} {
    %c0 = arith.constant 0 : index
    %c0_0 = arith.constant 0 : index
    %0 = vector.load %arg1[%c0, %c0_0] : memref<16x24xbf16, #tpu.memory_space<vmem>>, vector<16x24xbf16>
    %c0_1 = arith.constant 0 : index
    %c0_2 = arith.constant 0 : index
    %1 = vector.load %arg2[%c0_1, %c0_2] : memref<24x96xbf16, #tpu.memory_space<vmem>>, vector<24x96xbf16>
    %cst = arith.constant dense<0.000000e+00> : vector<16x96xf32>
    %2 = tpu.matmul %0, %1, %cst {dimension_numbers = #tpu.dot_dimension_numbers<[1], [0], [0], [1], [0, 0, 1, 1], [], []>} : vector<16x24xbf16>, vector<24x96xbf16>, vector<16x96xf32> -> vector<16x96xf32>
    %3 = vector.extract_strided_slice %2 {offsets = [0, 32], sizes = [16, 32], strides = [1, 1]} : vector<16x96xf32> to vector<16x32xf32>
    %4 = vector.extract_strided_slice %2 {offsets = [0, 64], sizes = [16, 32], strides = [1, 1]} : vector<16x96xf32> to vector<16x32xf32>
    %5 = vector.extract_strided_slice %2 {offsets = [0, 0], sizes = [16, 32], strides = [1, 1]} : vector<16x96xf32> to vector<16x32xf32>
    %c0_3 = arith.constant 0 : index
    %c0_4 = arith.constant 0 : index
    %6 = vector.load %arg3[%c0_3, %c0_4] : memref<1x32xf32, #tpu.memory_space<vmem>>, vector<1x32xf32>
    %7 = vector.broadcast %6 : vector<1x32xf32> to vector<16x32xf32>
    %8 = arith.addf %5, %7 : vector<16x32xf32>
    %cst_5 = arith.constant 0.000000e+00 : f32
    %9 = vector.broadcast %cst_5 : f32 to vector<16x32xf32>
    %10 = arith.maximumf %8, %9 : vector<16x32xf32>
    %11 = arith.truncf %10 : vector<16x32xf32> to vector<16x32xbf16>
    %c0_6 = arith.constant 0 : index
    %c0_7 = arith.constant 0 : index
    %12 = vector.load %arg4[%c0_6, %c0_7] : memref<32x32xbf16, #tpu.memory_space<vmem>>, vector<32x32xbf16>
    %cst_8 = arith.constant dense<0.000000e+00> : vector<16x32xf32>
    %13 = tpu.matmul %11, %12, %cst_8 {dimension_numbers = #tpu.dot_dimension_numbers<[1], [0], [0], [1], [0, 0, 1, 1], [], []>} : vector<16x32xbf16>, vector<32x32xbf16>, vector<16x32xf32> -> vector<16x32xf32>
    %c0_9 = arith.constant 0 : index
    %c0_10 = arith.constant 0 : index
    %14 = vector.load %arg5[%c0_9, %c0_10] : memref<1x32xf32, #tpu.memory_space<vmem>>, vector<1x32xf32>
    %15 = vector.broadcast %14 : vector<1x32xf32> to vector<16x32xf32>
    %16 = arith.addf %13, %15 : vector<16x32xf32>
    %cst_11 = arith.constant 0.000000e+00 : f32
    %17 = vector.broadcast %cst_11 : f32 to vector<16x32xf32>
    %18 = arith.maximumf %16, %17 : vector<16x32xf32>
    %19 = arith.truncf %18 : vector<16x32xf32> to vector<16x32xbf16>
    %c0_12 = arith.constant 0 : index
    %c0_13 = arith.constant 0 : index
    %20 = vector.load %arg6[%c0_12, %c0_13] : memref<32x32xbf16, #tpu.memory_space<vmem>>, vector<32x32xbf16>
    %cst_14 = arith.constant dense<0.000000e+00> : vector<16x32xf32>
    %21 = tpu.matmul %19, %20, %cst_14 {dimension_numbers = #tpu.dot_dimension_numbers<[1], [0], [0], [1], [0, 0, 1, 1], [], []>} : vector<16x32xbf16>, vector<32x32xbf16>, vector<16x32xf32> -> vector<16x32xf32>
    %22 = arith.addf %21, %3 : vector<16x32xf32>
    %c0_15 = arith.constant 0 : index
    %c0_16 = arith.constant 0 : index
    %23 = vector.load %arg7[%c0_15, %c0_16] : memref<1x32xf32, #tpu.memory_space<vmem>>, vector<1x32xf32>
    %24 = vector.broadcast %23 : vector<1x32xf32> to vector<16x32xf32>
    %25 = arith.addf %22, %24 : vector<16x32xf32>
    %cst_17 = arith.constant 0.000000e+00 : f32
    %26 = vector.broadcast %cst_17 : f32 to vector<16x32xf32>
    %27 = arith.maximumf %25, %26 : vector<16x32xf32>
    %28 = arith.truncf %27 : vector<16x32xf32> to vector<16x32xbf16>
    %c0_18 = arith.constant 0 : index
    %c0_19 = arith.constant 0 : index
    %29 = vector.load %arg8[%c0_18, %c0_19] : memref<32x32xbf16, #tpu.memory_space<vmem>>, vector<32x32xbf16>
    %cst_20 = arith.constant dense<0.000000e+00> : vector<16x32xf32>
    %30 = tpu.matmul %28, %29, %cst_20 {dimension_numbers = #tpu.dot_dimension_numbers<[1], [0], [0], [1], [0, 0, 1, 1], [], []>} : vector<16x32xbf16>, vector<32x32xbf16>, vector<16x32xf32> -> vector<16x32xf32>
    %c0_21 = arith.constant 0 : index
    %c0_22 = arith.constant 0 : index
    %31 = vector.load %arg9[%c0_21, %c0_22] : memref<1x32xf32, #tpu.memory_space<vmem>>, vector<1x32xf32>
    %32 = vector.broadcast %31 : vector<1x32xf32> to vector<16x32xf32>
    %33 = arith.addf %30, %32 : vector<16x32xf32>
    %cst_23 = arith.constant 0.000000e+00 : f32
    %34 = vector.broadcast %cst_23 : f32 to vector<16x32xf32>
    %35 = arith.maximumf %33, %34 : vector<16x32xf32>
    %36 = arith.truncf %35 : vector<16x32xf32> to vector<16x32xbf16>
    %c0_24 = arith.constant 0 : index
    %c0_25 = arith.constant 0 : index
    %37 = vector.load %arg10[%c0_24, %c0_25] : memref<32x32xbf16, #tpu.memory_space<vmem>>, vector<32x32xbf16>
    %cst_26 = arith.constant dense<0.000000e+00> : vector<16x32xf32>
    %38 = tpu.matmul %36, %37, %cst_26 {dimension_numbers = #tpu.dot_dimension_numbers<[1], [0], [0], [1], [0, 0, 1, 1], [], []>} : vector<16x32xbf16>, vector<32x32xbf16>, vector<16x32xf32> -> vector<16x32xf32>
    %39 = arith.addf %38, %4 : vector<16x32xf32>
    %c0_27 = arith.constant 0 : index
    %c0_28 = arith.constant 0 : index
    %40 = vector.load %arg11[%c0_27, %c0_28] : memref<1x32xf32, #tpu.memory_space<vmem>>, vector<1x32xf32>
    %41 = vector.broadcast %40 : vector<1x32xf32> to vector<16x32xf32>
    %42 = arith.addf %39, %41 : vector<16x32xf32>
    %cst_29 = arith.constant 0.000000e+00 : f32
    %43 = vector.broadcast %cst_29 : f32 to vector<16x32xf32>
    %44 = arith.maximumf %42, %43 : vector<16x32xf32>
    %45 = arith.truncf %44 : vector<16x32xf32> to vector<16x32xbf16>
    %c0_30 = arith.constant 0 : index
    %c0_31 = arith.constant 0 : index
    %46 = vector.load %arg12[%c0_30, %c0_31] : memref<32x16xbf16, #tpu.memory_space<vmem>>, vector<32x16xbf16>
    %cst_32 = arith.constant dense<0.000000e+00> : vector<16x16xf32>
    %47 = tpu.matmul %45, %46, %cst_32 {dimension_numbers = #tpu.dot_dimension_numbers<[1], [0], [0], [1], [0, 0, 1, 1], [], []>} : vector<16x32xbf16>, vector<32x16xbf16>, vector<16x16xf32> -> vector<16x16xf32>
    %c0_33 = arith.constant 0 : index
    %c0_34 = arith.constant 0 : index
    %48 = vector.load %arg13[%c0_33, %c0_34] : memref<1x16xf32, #tpu.memory_space<vmem>>, vector<1x16xf32>
    %49 = vector.broadcast %48 : vector<1x16xf32> to vector<16x16xf32>
    %50 = arith.addf %47, %49 : vector<16x16xf32>
    %c0_35 = arith.constant 0 : index
    %c0_36 = arith.constant 0 : index
    %51 = vector.load %arg14[%c0_35, %c0_36] : memref<16x16xf32, #tpu.memory_space<vmem>>, vector<16x16xf32>
    tpu.vector_store %arg14[%c0_35, %c0_36], %50 {strides = array<i32>} : memref<16x16xf32, #tpu.memory_space<vmem>>, vector<16x16xf32>,
    return
  }
  func.func @transform_0(%arg0: i32) -> (i32, i32) {
    %c0_i32 = arith.constant 0 : i32
    %c0_i32_0 = arith.constant 0 : i32
    return %arg0, %c0_i32 : i32, i32
  }
  func.func @transform_1(%arg0: i32) -> (i32, i32) {
    %c0_i32 = arith.constant 0 : i32
    %c0_i32_0 = arith.constant 0 : i32
    %c0_i32_1 = arith.constant 0 : i32
    return %c0_i32, %c0_i32_0 : i32, i32
  }
  func.func @transform_2(%arg0: i32) -> (i32, i32) {
    %c0_i32 = arith.constant 0 : i32
    %c0_i32_0 = arith.constant 0 : i32
    %c0_i32_1 = arith.constant 0 : i32
    return %c0_i32, %c0_i32_0 : i32, i32
  }
  func.func @transform_3(%arg0: i32) -> (i32, i32) {
    %c0_i32 = arith.constant 0 : i32
    %c0_i32_0 = arith.constant 0 : i32
    %c0_i32_1 = arith.constant 0 : i32
    return %c0_i32, %c0_i32_0 : i32, i32
  }
  func.func @transform_4(%arg0: i32) -> (i32, i32) {
    %c0_i32 = arith.constant 0 : i32
    %c0_i32_0 = arith.constant 0 : i32
    %c0_i32_1 = arith.constant 0 : i32
    return %c0_i32, %c0_i32_0 : i32, i32
  }
  func.func @transform_5(%arg0: i32) -> (i32, i32) {
    %c0_i32 = arith.constant 0 : i32
    %c0_i32_0 = arith.constant 0 : i32
    %c0_i32_1 = arith.constant 0 : i32
    return %c0_i32, %c0_i32_0 : i32, i32
  }
  func.func @transform_6(%arg0: i32) -> (i32, i32) {
    %c0_i32 = arith.constant 0 : i32
    %c0_i32_0 = arith.constant 0 : i32
    %c0_i32_1 = arith.constant 0 : i32
    return %c0_i32, %c0_i32_0 : i32, i32
  }
  func.func @transform_7(%arg0: i32) -> (i32, i32) {
    %c0_i32 = arith.constant 0 : i32
    %c0_i32_0 = arith.constant 0 : i32
    %c0_i32_1 = arith.constant 0 : i32
    return %c0_i32, %c0_i32_0 : i32, i32
  }
  func.func @transform_8(%arg0: i32) -> (i32, i32) {
    %c0_i32 = arith.constant 0 : i32
    %c0_i32_0 = arith.constant 0 : i32
    %c0_i32_1 = arith.constant 0 : i32
    return %c0_i32, %c0_i32_0 : i32, i32
  }
  func.func @transform_9(%arg0: i32) -> (i32, i32) {
    %c0_i32 = arith.constant 0 : i32
    %c0_i32_0 = arith.constant 0 : i32
    %c0_i32_1 = arith.constant 0 : i32
    return %c0_i32, %c0_i32_0 : i32, i32
  }
  func.func @transform_10(%arg0: i32) -> (i32, i32) {
    %c0_i32 = arith.constant 0 : i32
    %c0_i32_0 = arith.constant 0 : i32
    %c0_i32_1 = arith.constant 0 : i32
    return %c0_i32, %c0_i32_0 : i32, i32
  }
  func.func @transform_11(%arg0: i32) -> (i32, i32) {
    %c0_i32 = arith.constant 0 : i32
    %c0_i32_0 = arith.constant 0 : i32
    %c0_i32_1 = arith.constant 0 : i32
    return %c0_i32, %c0_i32_0 : i32, i32
  }
  func.func @transform_12(%arg0: i32) -> (i32, i32) {
    %c0_i32 = arith.constant 0 : i32
    %c0_i32_0 = arith.constant 0 : i32
    %c0_i32_1 = arith.constant 0 : i32
    return %c0_i32, %c0_i32_0 : i32, i32
  }
  func.func @transform_13(%arg0: i32) -> (i32, i32) {
    %c0_i32 = arith.constant 0 : i32
    %c0_i32_0 = arith.constant 0 : i32
    return %arg0, %c0_i32 : i32, i32
  }
}

</mosaic_0001>

<llo_original>
// kernel: tpu_custom_call.1
$region0: #{tpu_custom_call.1}
  #allocation0 [shape = 'u32[]', space=smem, size = 0x4, offset = 0x4, fixed_abs, tag = 'smem constant byte address 0x4 - core index']
  #allocation1 [shape = 'u32[144,128]{1,0:T(1,128)}', space=vmem, size = 0x12000, scoped, tag = 'internal scratch']
  %s0 = inlined_call_operand.hbm [shape: bf16[16,24], index: 0, kind: input, shape index: {}]
  %s1 = inlined_call_operand.hbm [shape: bf16[24,96], index: 1, kind: input, shape index: {}]
  %s2 = inlined_call_operand.vmem [shape: f32[1,32], index: 2, kind: input, shape index: {}]
  %s3 = inlined_call_operand.vmem [shape: bf16[32,32], index: 3, kind: input, shape index: {}]
  %s4 = inlined_call_operand.vmem [shape: f32[1,32], index: 4, kind: input, shape index: {}]
  %s5 = inlined_call_operand.vmem [shape: bf16[32,32], index: 5, kind: input, shape index: {}]
  %s6 = inlined_call_operand.hbm [shape: f32[1,32], index: 6, kind: input, shape index: {}]
  %s7 = inlined_call_operand.vmem [shape: bf16[32,32], index: 7, kind: input, shape index: {}]
  %s8 = inlined_call_operand.hbm [shape: f32[1,32], index: 8, kind: input, shape index: {}]
  %s9 = inlined_call_operand.hbm [shape: bf16[32,32], index: 9, kind: input, shape index: {}]
  %s10 = inlined_call_operand.vmem [shape: f32[1,32], index: 10, kind: input, shape index: {}]
  %s11 = inlined_call_operand.vmem [shape: bf16[32,16], index: 11, kind: input, shape index: {}]
  %s12 = inlined_call_operand.vmem [shape: f32[1,16], index: 12, kind: input, shape index: {}]
  %s13 = inlined_call_operand.hbm [shape: f32[16,16], index: 13, kind: output, shape index: {}]
  %s14 = sld [smem:[#allocation0]]
  $region82: #{tpu_custom_call.1} parent=0
    _
  %s16 = ssub.s32 1, %s14
  %s17 = scalar_select 0, %s16, %s14
  $region1: #{tpu_custom_call.1} parent=0
    #allocation2 [shape = 'u8[4096]{0}', space=vmem, size = 0x1000, scoped, tag = 'input window, operand 0, single buffered']
    #allocation3 [shape = 's32[1]{0}', space=sflag, size = 0x4, scoped, tag = 'scoped memory for tpu_custom_call.1']
    #allocation4 [shape = 's32[1]{0}', space=sflag, size = 0x4, scoped, tag = 'scoped memory for tpu_custom_call.1']
    #allocation5 [shape = 'u8[6144]{0}', space=vmem, size = 0x1800, scoped, tag = 'input window, operand 1, single buffered']
    #allocation6 [shape = 's32[1]{0}', space=sflag, size = 0x4, scoped, tag = 'scoped memory for tpu_custom_call.1']
    #allocation7 [shape = 'u8[512]{0}', space=vmem, size = 0x400, scoped, tag = 'input window, operand 6, single buffered']
    #allocation8 [shape = 'u8[512]{0}', space=vmem, size = 0x400, scoped, tag = 'input window, operand 8, single buffered']
    #allocation9 [shape = 's32[1]{0}', space=sflag, size = 0x4, scoped, tag = 'scoped memory for tpu_custom_call.1']
    #allocation10 [shape = 'u8[8192]{0}', space=vmem, size = 0x2000, scoped, tag = 'input window, operand 9, single buffered']
    #allocation11 [shape = 'u8[8192]{0}', space=vmem, size = 0x2000, scoped, tag = 'output window, operand 0, single buffered']
    %18 = vsyncpa [#allocation3], 0
    %19 = vsyncpa [#allocation6], 0
    %20 = vsyncpa [#allocation9], 0
    %21 = vsyncpa [#allocation4], 0
    // Predicated region
    $region2: #{tpu_custom_call.1} parent=1 // pred_check
      _
    $region3: #{tpu_custom_call.1} parent=1 // pred_check_branch
      %23 = sbr.rel (0) target = $region5
    $region4: #{tpu_custom_call.1} parent=1 // pred_region
      %s25 = ssub.s32 128, 128
      %26 = vsyncadd [#allocation3], %s25
      %s27 = sshll.u32 [#allocation2], 4
      %s28 = int_to_ptr.vmem [resolvable:$true] %s27
      %33 = dma.hbm_to_vmem [thread:$0]  %s0, 128, %s28, [#allocation3], 64, 64, 4
    $region5: #{tpu_custom_call.1} parent=1 // pred_fallthru
      _
    // Predicated region
    $region6: #{tpu_custom_call.1} parent=1 // pred_check
      _
    $region7: #{tpu_custom_call.1} parent=1 // pred_check_branch
      %35 = sbr.rel (0) target = $region9
    $region8: #{tpu_custom_call.1} parent=1 // pred_region
      %s37 = ssub.s32 192, 192
      %38 = vsyncadd [#allocation6], %s37
      %s39 = sshll.u32 [#allocation5], 4
      %s40 = int_to_ptr.vmem [resolvable:$true] %s39
      %45 = dma.hbm_to_vmem [thread:$0]  %s1, 192, %s40, [#allocation6], 64, 64, 4
    $region9: #{tpu_custom_call.1} parent=1 // pred_fallthru
      _
    // Predicated region
    $region10: #{tpu_custom_call.1} parent=1 // pred_check
      _
    $region11: #{tpu_custom_call.1} parent=1 // pred_check_branch
      %47 = sbr.rel (0) target = $region13
    $region12: #{tpu_custom_call.1} parent=1 // pred_region
      _
    $region13: #{tpu_custom_call.1} parent=1 // pred_fallthru
      _
    // Predicated region
    $region14: #{tpu_custom_call.1} parent=1 // pred_check
      _
    $region15: #{tpu_custom_call.1} parent=1 // pred_check_branch
      %49 = sbr.rel (0) target = $region17
    $region16: #{tpu_custom_call.1} parent=1 // pred_region
      _
    $region17: #{tpu_custom_call.1} parent=1 // pred_fallthru
      _
    // Predicated region
    $region18: #{tpu_custom_call.1} parent=1 // pred_check
      _
    $region19: #{tpu_custom_call.1} parent=1 // pred_check_branch
      %51 = sbr.rel (0) target = $region21
    $region20: #{tpu_custom_call.1} parent=1 // pred_region
      _
    $region21: #{tpu_custom_call.1} parent=1 // pred_fallthru
      _
    // Predicated region
    $region22: #{tpu_custom_call.1} parent=1 // pred_check
      _
    $region23: #{tpu_custom_call.1} parent=1 // pred_check_branch
      %53 = sbr.rel (0) target = $region25
    $region24: #{tpu_custom_call.1} parent=1 // pred_region
      _
    $region25: #{tpu_custom_call.1} parent=1 // pred_fallthru
      _
    // Predicated region
    $region26: #{tpu_custom_call.1} parent=1 // pred_check
      _
    $region27: #{tpu_custom_call.1} parent=1 // pred_check_branch
      %55 = sbr.rel (0) target = $region29
    $region28: #{tpu_custom_call.1} parent=1 // pred_region
      %s57 = ssub.s32 16, 16
      %58 = vsyncadd [#allocation6], %s57
      %s60 = sshll.u32 [#allocation7], 4
      %s61 = int_to_ptr.vmem [resolvable:$true] %s60
      %63 = dma.hbm_to_vmem [thread:$0]  %s6, 16, %s61, [#allocation6]
    $region29: #{tpu_custom_call.1} parent=1 // pred_fallthru
      _
    // Predicated region
    $region30: #{tpu_custom_call.1} parent=1 // pred_check
      _
    $region31: #{tpu_custom_call.1} parent=1 // pred_check_branch
      %65 = sbr.rel (0) target = $region33
    $region32: #{tpu_custom_call.1} parent=1 // pred_region
      _
    $region33: #{tpu_custom_call.1} parent=1 // pred_fallthru
      _
    // Predicated region
    $region34: #{tpu_custom_call.1} parent=1 // pred_check
      _
    $region35: #{tpu_custom_call.1} parent=1 // pred_check_branch
      %67 = sbr.rel (0) target = $region37
    $region36: #{tpu_custom_call.1} parent=1 // pred_region
      %s69 = ssub.s32 16, 16
      %70 = vsyncadd [#allocation9], %s69
      %s72 = sshll.u32 [#allocation8], 4
      %s73 = int_to_ptr.vmem [resolvable:$true] %s72
      %75 = dma.hbm_to_vmem [thread:$0]  %s8, 16, %s73, [#allocation9]
    $region37: #{tpu_custom_call.1} parent=1 // pred_fallthru
      _
    // Predicated region
    $region38: #{tpu_custom_call.1} parent=1 // pred_check
      _
    $region39: #{tpu_custom_call.1} parent=1 // pred_check_branch
      %77 = sbr.rel (0) target = $region41
    $region40: #{tpu_custom_call.1} parent=1 // pred_region
      %s79 = ssub.s32 256, 256
      %80 = vsyncadd [#allocation9], %s79
      %s81 = sshll.u32 [#allocation10], 4
      %s82 = int_to_ptr.vmem [resolvable:$true] %s81
      %87 = dma.hbm_to_vmem [thread:$0]  %s9, 256, %s82, [#allocation9], 64, 64, 4
    $region41: #{tpu_custom_call.1} parent=1 // pred_fallthru
      _
    // Predicated region
    $region42: #{tpu_custom_call.1} parent=1 // pred_check
      _
    $region43: #{tpu_custom_call.1} parent=1 // pred_check_branch
      %89 = sbr.rel (0) target = $region45
    $region44: #{tpu_custom_call.1} parent=1 // pred_region
      _
    $region45: #{tpu_custom_call.1} parent=1 // pred_fallthru
      _
    // Predicated region
    $region46: #{tpu_custom_call.1} parent=1 // pred_check
      _
    $region47: #{tpu_custom_call.1} parent=1 // pred_check_branch
      %91 = sbr.rel (0) target = $region49
    $region48: #{tpu_custom_call.1} parent=1 // pred_region
      _
    $region49: #{tpu_custom_call.1} parent=1 // pred_fallthru
      _
    // Predicated region
    $region50: #{tpu_custom_call.1} parent=1 // pred_check
      _
    $region51: #{tpu_custom_call.1} parent=1 // pred_check_branch
      %93 = sbr.rel (0) target = $region53
    $region52: #{tpu_custom_call.1} parent=1 // pred_region
      _
    $region53: #{tpu_custom_call.1} parent=1 // pred_fallthru
      _
    // Predicated region
    $region54: #{tpu_custom_call.1} parent=1 // pred_check
      _
    $region55: #{tpu_custom_call.1} parent=1 // pred_check_branch
      %95 = sbr.rel (0) target = $region57
    $region56: #{tpu_custom_call.1} parent=1 // pred_region
      %96 = dma.done [#allocation3], 128
    $region57: #{tpu_custom_call.1} parent=1 // pred_fallthru
      _
    // Predicated region
    $region58: #{tpu_custom_call.1} parent=1 // pred_check
      _
    $region59: #{tpu_custom_call.1} parent=1 // pred_check_branch
      %98 = sbr.rel (0) target = $region61
    $region60: #{tpu_custom_call.1} parent=1 // pred_region
      %99 = dma.done [#allocation6], 192
    $region61: #{tpu_custom_call.1} parent=1 // pred_fallthru
      _
    // Predicated region
    $region62: #{tpu_custom_call.1} parent=1 // pred_check
      _
    $region63: #{tpu_custom_call.1} parent=1 // pred_check_branch
      %101 = sbr.rel (0) target = $region65
    $region64: #{tpu_custom_call.1} parent=1 // pred_region
      %102 = dma.done [#allocation6], 16
    $region65: #{tpu_custom_call.1} parent=1 // pred_fallthru
      _
    // Predicated region
    $region66: #{tpu_custom_call.1} parent=1 // pred_check
      _
    $region67: #{tpu_custom_call.1} parent=1 // pred_check_branch
      %104 = sbr.rel (0) target = $region69
    $region68: #{tpu_custom_call.1} parent=1 // pred_region
      %105 = dma.done [#allocation9], 16
    $region69: #{tpu_custom_call.1} parent=1 // pred_fallthru
      _
    // Predicated region
    $region70: #{tpu_custom_call.1} parent=1 // pred_check
      _
    $region71: #{tpu_custom_call.1} parent=1 // pred_check_branch
      %107 = sbr.rel (0) target = $region73
    $region72: #{tpu_custom_call.1} parent=1 // pred_region
      %108 = dma.done [#allocation9], 256
    $region73: #{tpu_custom_call.1} parent=1 // pred_fallthru
      _
    %v110 = vld [vmem:[#allocation2] sm:$0xf]
    %v111 = vld [vmem:[#allocation2 + $0x4] sm:$0xf]
    %v112 = vld [vmem:[#allocation5] sm:$0xf]
    %v113 = vld [vmem:[#allocation5 + $0x4] sm:$0xf]
    %v114 = vld [vmem:[#allocation5 + $0x8] sm:$0xf]
    %v117 = vunpack.c.l.b16 %v110
    %v118 = vunpack.c.l.b16 %v111
    %v119 = vpack.c.b16 %v118, %v117
    %v123 = vunpack.c.l.b16 %v112
    %v124 = vunpack.c.l.b16 %v113
    %v125 = vunpack.c.l.b16 %v114
    %v126 = vpack.c.b16 %v124, %v123
    %v127 = vpack.c.b16 %v125, %v125
    %vm129 = vcmask 195584
    %v131 = vsel %vm129, %v119, 0
    %vm133 = vcmask 1043456
    %v135 = vsel %vm133, %v127, 0
    %137 = vmatprep.subr.bf16.mxu0 0
    %138 = vmatpush1.bf16.msra.mxu0 %v126
    %139 = vmatprep.subr.bf16.mxu0 0
    %140 = vmatpush1.bf16.msra.mxu0 %v135
    %141 = vmatprep.subr.bf16.mxu0 0
    %142 = vmatpush1.bf16.msra.mxu0 0
    %143 = vmatprep.subr.bf16.mxu0 0
    %144 = vmatpush1.bf16.msra.mxu0 0
    %145 = vmatprep.subr.bf16.mxu0 0
    %146 = vmatpush1.bf16.msra.mxu0 0
    %147 = vmatprep.subr.bf16.mxu0 0
    %148 = vmatpush1.bf16.msra.mxu0 0
    %149 = vmatprep.subr.bf16.mxu0 0
    %150 = vmatpush1.bf16.msra.mxu0 0
    %151 = vmatprep.subr.bf16.mxu0 0
    %152 = vmatpush1.bf16.msra.mxu0 0
    %153 = vmatprep.subr.bf16.mxu0 0
    %154 = vmatpush1.bf16.msra.mxu0 0
    %155 = vmatprep.subr.bf16.mxu0 0
    %156 = vmatpush1.bf16.msra.mxu0 0
    %157 = vmatprep.subr.bf16.mxu0 0
    %158 = vmatpush1.bf16.msra.mxu0 0
    %159 = vmatprep.subr.bf16.mxu0 0
    %160 = vmatpush1.bf16.msra.mxu0 0
    %161 = vmatprep.subr.bf16.mxu0 0
    %162 = vmatpush1.bf16.msra.mxu0 0
    %163 = vmatprep.subr.bf16.mxu0 0
    %164 = vmatpush1.bf16.msra.mxu0 0
    %165 = vmatprep.subr.bf16.mxu0 0
    %166 = vmatpush1.bf16.msra.mxu0 0
    %167 = vmatprep.subr.bf16.mxu0 0
    %168 = vmatpush1.bf16.msra.mxu0 0
    %169 = vmatprep.mubr.bf16.mxu0 0
    %170 = vmatmul.mubr.bf16.gmra.mrb[0].mxu0 %v131
    %v171 = vpop.f32.mrb[0].mxu0
    %v172 = vadd.f32 0.0, %v171
    %v173 = vpop.f32.mrb[0].mxu0
    %v174 = vpop.f32.mrb[0].mxu0
    %v175 = vadd.f32 0.0, %v174
    %v176 = vpop.f32.mrb[0].mxu0
    %177 = vdwg.mxu0
    %v178 = vld [vmem:[%s2] sm:$0x1]
    %v180 = vlaneseq
    %v181 = vshrl.u32 %v180, 7
    %v182 = vsub.s32 0, %v181
    %v183 = vrot.slane %v178, %v182
    %v185 = vadd.f32 %v172, %v183
    %v186 = vadd.f32 %v175, %v183
    %v187 = vmax.f32 %v185, 0.0
    %v188 = vmax.f32 %v186, 0.0
    %v189 = vpack.c.bf16 %v188, %v187
    %v190 = vld [vmem:[%s3] sm:$0xf]
    %v191 = vld [vmem:[%s3 + $0x4] sm:$0xf]
    %v192 = vld [vmem:[%s3 + $0x8] sm:$0xf]
    %v193 = vld [vmem:[%s3 + $0xc] sm:$0xf]
    %v194 = vld [vmem:[%s4] sm:$0x1]
    %v196 = vlaneseq
    %v197 = vshrl.u32 %v196, 7
    %v198 = vsub.s32 0, %v197
    %v199 = vrot.slane %v194, %v198
    %v205 = vunpack.c.l.b16 %v190
    %v206 = vunpack.c.l.b16 %v191
    %v207 = vunpack.c.l.b16 %v192
    %v208 = vunpack.c.l.b16 %v193
    %v209 = vpack.c.b16 %v206, %v205
    %v210 = vpack.c.b16 %v208, %v207
    %vm213 = vcmask 261120
    %v215 = vsel %vm213, %v189, 0
    %217 = vmatprep.subr.bf16.mxu0 0
    %218 = vmatpush1.bf16.msra.mxu0 %v209
    %219 = vmatprep.subr.bf16.mxu0 0
    %220 = vmatpush1.bf16.msra.mxu0 %v210
    %221 = vmatprep.subr.bf16.mxu0 0
    %222 = vmatpush1.bf16.msra.mxu0 0
    %223 = vmatprep.subr.bf16.mxu0 0
    %224 = vmatpush1.bf16.msra.mxu0 0
    %225 = vmatprep.subr.bf16.mxu0 0
    %226 = vmatpush1.bf16.msra.mxu0 0
    %227 = vmatprep.subr.bf16.mxu0 0
    %228 = vmatpush1.bf16.msra.mxu0 0
    %229 = vmatprep.subr.bf16.mxu0 0
    %230 = vmatpush1.bf16.msra.mxu0 0
    %231 = vmatprep.subr.bf16.mxu0 0
    %232 = vmatpush1.bf16.msra.mxu0 0
    %233 = vmatprep.subr.bf16.mxu0 0
    %234 = vmatpush1.bf16.msra.mxu0 0
    %235 = vmatprep.subr.bf16.mxu0 0
    %236 = vmatpush1.bf16.msra.mxu0 0
    %237 = vmatprep.subr.bf16.mxu0 0
    %238 = vmatpush1.bf16.msra.mxu0 0
    %239 = vmatprep.subr.bf16.mxu0 0
    %240 = vmatpush1.bf16.msra.mxu0 0
    %241 = vmatprep.subr.bf16.mxu0 0
    %242 = vmatpush1.bf16.msra.mxu0 0
    %243 = vmatprep.subr.bf16.mxu0 0
    %244 = vmatpush1.bf16.msra.mxu0 0
    %245 = vmatprep.subr.bf16.mxu0 0
    %246 = vmatpush1.bf16.msra.mxu0 0
    %247 = vmatprep.subr.bf16.mxu0 0
    %248 = vmatpush1.bf16.msra.mxu0 0
    %249 = vmatprep.mubr.bf16.mxu0 0
    %250 = vmatmul.mubr.bf16.gmra.mrb[0].mxu0 %v215
    %v251 = vpop.f32.mrb[0].mxu0
    %v252 = vadd.f32 %v199, %v251
    %v253 = vpop.f32.mrb[0].mxu0
    %v254 = vpop.f32.mrb[0].mxu0
    %v255 = vadd.f32 %v199, %v254
    %v256 = vpop.f32.mrb[0].mxu0
    %257 = vdwg.mxu0
    %v258 = vmax.f32 %v252, 0.0
    %v259 = vmax.f32 %v255, 0.0
    %v260 = vpack.c.bf16 %v259, %v258
    %v261 = vld [vmem:[%s5] sm:$0xf]
    %v262 = vld [vmem:[%s5 + $0x4] sm:$0xf]
    %v263 = vld [vmem:[%s5 + $0x8] sm:$0xf]
    %v264 = vld [vmem:[%s5 + $0xc] sm:$0xf]
    %v269 = vunpack.c.l.b16 %v261
    %v270 = vunpack.c.l.b16 %v262
    %v271 = vunpack.c.l.b16 %v263
    %v272 = vunpack.c.l.b16 %v264
    %v273 = vpack.c.b16 %v270, %v269
    %v274 = vpack.c.b16 %v272, %v271
    %279 = vrot.lane.b32.xlu0 %v172, 96
    %v280 = vpop.permute.xlu0 %279
    %281 = vrot.lane.b32.xlu0 %v175, 96
    %v282 = vpop.permute.xlu0 %281
    %v286 = vsel %vm213, %v260, 0
    %288 = vmatprep.subr.bf16.mxu0 0
    %289 = vmatpush1.bf16.msra.mxu0 %v273
    %290 = vmatprep.subr.bf16.mxu0 0
    %291 = vmatpush1.bf16.msra.mxu0 %v274
    %292 = vmatprep.subr.bf16.mxu0 0
    %293 = vmatpush1.bf16.msra.mxu0 0
    %294 = vmatprep.subr.bf16.mxu0 0
    %295 = vmatpush1.bf16.msra.mxu0 0
    %296 = vmatprep.subr.bf16.mxu0 0
    %297 = vmatpush1.bf16.msra.mxu0 0
    %298 = vmatprep.subr.bf16.mxu0 0
    %299 = vmatpush1.bf16.msra.mxu0 0
    %300 = vmatprep.subr.bf16.mxu0 0
    %301 = vmatpush1.bf16.msra.mxu0 0
    %302 = vmatprep.subr.bf16.mxu0 0
    %303 = vmatpush1.bf16.msra.mxu0 0
    %304 = vmatprep.subr.bf16.mxu0 0
    %305 = vmatpush1.bf16.msra.mxu0 0
    %306 = vmatprep.subr.bf16.mxu0 0
    %307 = vmatpush1.bf16.msra.mxu0 0
    %308 = vmatprep.subr.bf16.mxu0 0
    %309 = vmatpush1.bf16.msra.mxu0 0
    %310 = vmatprep.subr.bf16.mxu0 0
    %311 = vmatpush1.bf16.msra.mxu0 0
    %312 = vmatprep.subr.bf16.mxu0 0
    %313 = vmatpush1.bf16.msra.mxu0 0
    %314 = vmatprep.subr.bf16.mxu0 0
    %315 = vmatpush1.bf16.msra.mxu0 0
    %316 = vmatprep.subr.bf16.mxu0 0
    %317 = vmatpush1.bf16.msra.mxu0 0
    %318 = vmatprep.subr.bf16.mxu0 0
    %319 = vmatpush1.bf16.msra.mxu0 0
    %320 = vmatprep.mubr.bf16.mxu0 0
    %321 = vmatmul.mubr.bf16.gmra.mrb[0].mxu0 %v286
    %v322 = vpop.f32.mrb[0].mxu0
    %v323 = vadd.f32 %v280, %v322
    %v324 = vpop.f32.mrb[0].mxu0
    %v325 = vpop.f32.mrb[0].mxu0
    %v326 = vadd.f32 %v282, %v325
    %v327 = vpop.f32.mrb[0].mxu0
    %328 = vdwg.mxu0
    %v329 = vld [vmem:[#allocation7] sm:$0x1]
    %v331 = vlaneseq
    %v332 = vshrl.u32 %v331, 7
    %v333 = vsub.s32 0, %v332
    %v334 = vrot.slane %v329, %v333
    %v336 = vadd.f32 %v323, %v334
    %v337 = vadd.f32 %v326, %v334
    %v338 = vmax.f32 %v336, 0.0
    %v339 = vmax.f32 %v337, 0.0
    %v340 = vpack.c.bf16 %v339, %v338
    %v341 = vld [vmem:[%s7] sm:$0xf]
    %v342 = vld [vmem:[%s7 + $0x4] sm:$0xf]
    %v343 = vld [vmem:[%s7 + $0x8] sm:$0xf]
    %v344 = vld [vmem:[%s7 + $0xc] sm:$0xf]
    %v345 = vld [vmem:[#allocation8] sm:$0x1]
    %v347 = vlaneseq
    %v348 = vshrl.u32 %v347, 7
    %v349 = vsub.s32 0, %v348
    %v350 = vrot.slane %v345, %v349
    %v356 = vunpack.c.l.b16 %v341
    %v357 = vunpack.c.l.b16 %v342
    %v358 = vunpack.c.l.b16 %v343
    %v359 = vunpack.c.l.b16 %v344
    %v360 = vpack.c.b16 %v357, %v356
    %v361 = vpack.c.b16 %v359, %v358
    %v365 = vsel %vm213, %v340, 0
    %367 = vmatprep.subr.bf16.mxu0 0
    %368 = vmatpush1.bf16.msra.mxu0 %v360
    %369 = vmatprep.subr.bf16.mxu0 0
    %370 = vmatpush1.bf16.msra.mxu0 %v361
    %371 = vmatprep.subr.bf16.mxu0 0
    %372 = vmatpush1.bf16.msra.mxu0 0
    %373 = vmatprep.subr.bf16.mxu0 0
    %374 = vmatpush1.bf16.msra.mxu0 0
    %375 = vmatprep.subr.bf16.mxu0 0
    %376 = vmatpush1.bf16.msra.mxu0 0
    %377 = vmatprep.subr.bf16.mxu0 0
    %378 = vmatpush1.bf16.msra.mxu0 0
    %379 = vmatprep.subr.bf16.mxu0 0
    %380 = vmatpush1.bf16.msra.mxu0 0
    %381 = vmatprep.subr.bf16.mxu0 0
    %382 = vmatpush1.bf16.msra.mxu0 0
    %383 = vmatprep.subr.bf16.mxu0 0
    %384 = vmatpush1.bf16.msra.mxu0 0
    %385 = vmatprep.subr.bf16.mxu0 0
    %386 = vmatpush1.bf16.msra.mxu0 0
    %387 = vmatprep.subr.bf16.mxu0 0
    %388 = vmatpush1.bf16.msra.mxu0 0
    %389 = vmatprep.subr.bf16.mxu0 0
    %390 = vmatpush1.bf16.msra.mxu0 0
    %391 = vmatprep.subr.bf16.mxu0 0
    %392 = vmatpush1.bf16.msra.mxu0 0
    %393 = vmatprep.subr.bf16.mxu0 0
    %394 = vmatpush1.bf16.msra.mxu0 0
    %395 = vmatprep.subr.bf16.mxu0 0
    %396 = vmatpush1.bf16.msra.mxu0 0
    %397 = vmatprep.subr.bf16.mxu0 0
    %398 = vmatpush1.bf16.msra.mxu0 0
    %399 = vmatprep.mubr.bf16.mxu0 0
    %400 = vmatmul.mubr.bf16.gmra.mrb[0].mxu0 %v365
    %v401 = vpop.f32.mrb[0].mxu0
    %v402 = vadd.f32 %v350, %v401
    %v403 = vpop.f32.mrb[0].mxu0
    %v404 = vpop.f32.mrb[0].mxu0
    %v405 = vadd.f32 %v350, %v404
    %v406 = vpop.f32.mrb[0].mxu0
    %407 = vdwg.mxu0
    %v408 = vmax.f32 %v402, 0.0
    %v409 = vmax.f32 %v405, 0.0
    %v410 = vpack.c.bf16 %v409, %v408
    %v411 = vld [vmem:[#allocation10] sm:$0xf]
    %v412 = vld [vmem:[#allocation10 + $0x4] sm:$0xf]
    %v413 = vld [vmem:[#allocation10 + $0x8] sm:$0xf]
    %v414 = vld [vmem:[#allocation10 + $0xc] sm:$0xf]
    %v419 = vunpack.c.l.b16 %v411
    %v420 = vunpack.c.l.b16 %v412
    %v421 = vunpack.c.l.b16 %v413
    %v422 = vunpack.c.l.b16 %v414
    %v423 = vpack.c.b16 %v420, %v419
    %v424 = vpack.c.b16 %v422, %v421
    %427 = vrot.lane.b32.xlu0 %v172, 64
    %v428 = vpop.permute.xlu0 %427
    %429 = vrot.lane.b32.xlu0 %v175, 64
    %v430 = vpop.permute.xlu0 %429
    %v434 = vsel %vm213, %v410, 0
    %436 = vmatprep.subr.bf16.mxu0 0
    %437 = vmatpush1.bf16.msra.mxu0 %v423
    %438 = vmatprep.subr.bf16.mxu0 0
    %439 = vmatpush1.bf16.msra.mxu0 %v424
    %440 = vmatprep.subr.bf16.mxu0 0
    %441 = vmatpush1.bf16.msra.mxu0 0
    %442 = vmatprep.subr.bf16.mxu0 0
    %443 = vmatpush1.bf16.msra.mxu0 0
    %444 = vmatprep.subr.bf16.mxu0 0
    %445 = vmatpush1.bf16.msra.mxu0 0
    %446 = vmatprep.subr.bf16.mxu0 0
    %447 = vmatpush1.bf16.msra.mxu0 0
    %448 = vmatprep.subr.bf16.mxu0 0
    %449 = vmatpush1.bf16.msra.mxu0 0
    %450 = vmatprep.subr.bf16.mxu0 0
    %451 = vmatpush1.bf16.msra.mxu0 0
    %452 = vmatprep.subr.bf16.mxu0 0
    %453 = vmatpush1.bf16.msra.mxu0 0
    %454 = vmatprep.subr.bf16.mxu0 0
    %455 = vmatpush1.bf16.msra.mxu0 0
    %456 = vmatprep.subr.bf16.mxu0 0
    %457 = vmatpush1.bf16.msra.mxu0 0
    %458 = vmatprep.subr.bf16.mxu0 0
    %459 = vmatpush1.bf16.msra.mxu0 0
    %460 = vmatprep.subr.bf16.mxu0 0
    %461 = vmatpush1.bf16.msra.mxu0 0
    %462 = vmatprep.subr.bf16.mxu0 0
    %463 = vmatpush1.bf16.msra.mxu0 0
    %464 = vmatprep.subr.bf16.mxu0 0
    %465 = vmatpush1.bf16.msra.mxu0 0
    %466 = vmatprep.subr.bf16.mxu0 0
    %467 = vmatpush1.bf16.msra.mxu0 0
    %468 = vmatprep.mubr.bf16.mxu0 0
    %469 = vmatmul.mubr.bf16.gmra.mrb[0].mxu0 %v434
    %v470 = vpop.f32.mrb[0].mxu0
    %v471 = vadd.f32 %v428, %v470
    %v472 = vpop.f32.mrb[0].mxu0
    %v473 = vpop.f32.mrb[0].mxu0
    %v474 = vadd.f32 %v430, %v473
    %v475 = vpop.f32.mrb[0].mxu0
    %476 = vdwg.mxu0
    %v477 = vld [vmem:[%s10] sm:$0x1]
    %v479 = vlaneseq
    %v480 = vshrl.u32 %v479, 7
    %v481 = vsub.s32 0, %v480
    %v482 = vrot.slane %v477, %v481
    %v484 = vadd.f32 %v471, %v482
    %v485 = vadd.f32 %v474, %v482
    %v486 = vmax.f32 %v484, 0.0
    %v487 = vmax.f32 %v485, 0.0
    %v488 = vpack.c.bf16 %v487, %v486
    %v489 = vld [vmem:[%s11] sm:$0xf]
    %v490 = vld [vmem:[%s11 + $0x4] sm:$0xf]
    %v491 = vld [vmem:[%s11 + $0x8] sm:$0xf]
    %v492 = vld [vmem:[%s11 + $0xc] sm:$0xf]
    %v493 = vld [vmem:[%s12] sm:$0x1]
    %v495 = vlaneseq
    %v496 = vshrl.u32 %v495, 7
    %v497 = vsub.s32 0, %v496
    %v498 = vrot.slane %v493, %v497
    %v504 = vunpack.c.l.b16 %v489
    %v505 = vunpack.c.l.b16 %v490
    %v506 = vunpack.c.l.b16 %v491
    %v507 = vunpack.c.l.b16 %v492
    %v508 = vpack.c.b16 %v505, %v504
    %v509 = vpack.c.b16 %v507, %v506
    %v513 = vsel %vm213, %v488, 0
    %515 = vmatprep.subr.bf16.mxu0 0
    %516 = vmatpush1.bf16.msra.mxu0 %v508
    %517 = vmatprep.subr.bf16.mxu0 0
    %518 = vmatpush1.bf16.msra.mxu0 %v509
    %519 = vmatprep.subr.bf16.mxu0 0
    %520 = vmatpush1.bf16.msra.mxu0 0
    %521 = vmatprep.subr.bf16.mxu0 0
    %522 = vmatpush1.bf16.msra.mxu0 0
    %523 = vmatprep.subr.bf16.mxu0 0
    %524 = vmatpush1.bf16.msra.mxu0 0
    %525 = vmatprep.subr.bf16.mxu0 0
    %526 = vmatpush1.bf16.msra.mxu0 0
    %527 = vmatprep.subr.bf16.mxu0 0
    %528 = vmatpush1.bf16.msra.mxu0 0
    %529 = vmatprep.subr.bf16.mxu0 0
    %530 = vmatpush1.bf16.msra.mxu0 0
    %531 = vmatprep.subr.bf16.mxu0 0
    %532 = vmatpush1.bf16.msra.mxu0 0
    %533 = vmatprep.subr.bf16.mxu0 0
    %534 = vmatpush1.bf16.msra.mxu0 0
    %535 = vmatprep.subr.bf16.mxu0 0
    %536 = vmatpush1.bf16.msra.mxu0 0
    %537 = vmatprep.subr.bf16.mxu0 0
    %538 = vmatpush1.bf16.msra.mxu0 0
    %539 = vmatprep.subr.bf16.mxu0 0
    %540 = vmatpush1.bf16.msra.mxu0 0
    %541 = vmatprep.subr.bf16.mxu0 0
    %542 = vmatpush1.bf16.msra.mxu0 0
    %543 = vmatprep.subr.bf16.mxu0 0
    %544 = vmatpush1.bf16.msra.mxu0 0
    %545 = vmatprep.subr.bf16.mxu0 0
    %546 = vmatpush1.bf16.msra.mxu0 0
    %547 = vmatprep.mubr.bf16.mxu0 0
    %548 = vmatmul.mubr.bf16.gmra.mrb[0].mxu0 %v513
    %v549 = vpop.f32.mrb[0].mxu0
    %v550 = vadd.f32 %v498, %v549
    %v551 = vpop.f32.mrb[0].mxu0
    %v552 = vpop.f32.mrb[0].mxu0
    %v553 = vadd.f32 %v498, %v552
    %v554 = vpop.f32.mrb[0].mxu0
    %555 = vdwg.mxu0
    %vm556 = vcmask 130048
    %557 = vst.msk [vmem:[#allocation11] sm:$0xff] %vm556, %v550
    %558 = vst.msk [vmem:[#allocation11 + $0x8] sm:$0xff] %vm556, %v553
    // Predicated region
    $region74: #{tpu_custom_call.1} parent=1 // pred_check
      _
    $region75: #{tpu_custom_call.1} parent=1 // pred_check_branch
      %560 = sbr.rel (0) target = $region77
    $region76: #{tpu_custom_call.1} parent=1 // pred_region
      %s562 = ssub.s32 256, 256
      %563 = vsyncadd [#allocation4], %s562
      %s564 = sshll.u32 [#allocation11], 4
      %s565 = int_to_ptr.vmem [resolvable:$true] %s564
      %570 = dma.vmem_to_hbm [thread:$0]  %s565, 256, %s13, [#allocation4], 128, 128, 8
    $region77: #{tpu_custom_call.1} parent=1 // pred_fallthru
      _
    // Predicated region
    $region78: #{tpu_custom_call.1} parent=1 // pred_check
      _
    $region79: #{tpu_custom_call.1} parent=1 // pred_check_branch
      %572 = sbr.rel (0) target = $region81
    $region80: #{tpu_custom_call.1} parent=1 // pred_region
      %573 = dma.done [#allocation4], 256
    $region81: #{tpu_custom_call.1} parent=1 // pred_fallthru
      _
    %574 = vsyncpa [#allocation3], 1
    %575 = vsyncpa [#allocation6], 1
    %576 = vsyncpa [#allocation9], 1
    %577 = vsyncpa [#allocation4], 1

</llo_original>
